<compile_context>
chip_gen: v6e
topology: v6e:2x2x1
jax: 0.10.0
libtpu: 0.0.40
codegen_flags: <defaults>
</compile_context>

<pallas_src>
import jax
import jax.numpy as jnp
from jax.experimental import pallas as pl
from jax.experimental.pallas import tpu as pltpu


POOL_PAD = 56                 # pooled spatial 49 padded up to a multiple of 8
ROWS_PER_IMG = 4 * POOL_PAD   # 4 pool offsets x 56 padded pooled positions


# ----------------------------------------------------------------------------
# Fused kernel: conv-matmul + max-pool + bias + ReLU + FC for a block of images
# ----------------------------------------------------------------------------
def simplenet_fused_kernel(p_ref, wc_ref, bc_ref, wf_ref, bf_ref, o_ref):
    # p_ref : (bt*224, 27)  im2col patches, flat row = b*224 + q*56 + p
    #                        (rows p=49..55 of every group are zero)
    # wc_ref: (27, 16)      conv weight, row = (kh*3+kw)*3+ci, col = out channel
    # bc_ref: (1, 16)       conv bias
    # wf_ref: (2, 56, 16)   fc weight, [o, p, c] = w_fc[o, c*49+p]; rows 49..55 zero
    # bf_ref: (1, 2)        fc bias
    # o_ref : (bt, 1, 2)    logits
    bt = o_ref.shape[0]
    pp = wf_ref.shape[1]      # 56

    # ONE block-batched MXU matmul for the whole step.
    conv = jnp.dot(p_ref[...], wc_ref[...],
                   preferred_element_type=jnp.float32)        # (bt*224, 16)
    conv = conv.reshape(bt, 4 * pp, 16)                        # free: 224 % 8 == 0

    # 2x2 max pool == elementwise max of the four sublane-aligned 56-row groups.
    pooled = jnp.maximum(
        jnp.maximum(conv[:, 0:pp], conv[:, pp:2 * pp]),
        jnp.maximum(conv[:, 2 * pp:3 * pp], conv[:, 3 * pp:4 * pp]))   # (bt,56,16)

    # bias + ReLU once, AFTER the max (valid: shared bias + monotone ops).
    act = jnp.maximum(pooled + bc_ref[...], 0.0)               # (bt, 56, 16)

    # FC with 2 outputs: batched multiply + lane-reduce + sublane-reduce.
    # Padded rows 49..55 contribute 0 because wf rows there are zero.
    def fc_out(w):                                             # w: (56, 16)
        t = jnp.sum(act * w, axis=2, keepdims=True)            # (bt, 56, 1)
        return jnp.sum(t, axis=1, keepdims=True)               # (bt, 1, 1)

    s0 = fc_out(wf_ref[0])
    s1 = fc_out(wf_ref[1])
    logits = jnp.concatenate([s0, s1], axis=2) + bf_ref[...]   # (bt, 1, 2)
    o_ref[...] = logits.astype(o_ref.dtype)                    # single store


# ----------------------------------------------------------------------------
# Glue: im2col patch construction (pure data movement, XLA side)
# ----------------------------------------------------------------------------
def im2col_pool_groups(x_nhwc, pool_pad=POOL_PAD):
    """x_nhwc: (B,16,16,3) -> (B*4*pool_pad, 27); flat row = b*224 + q*56 + p."""
    B = x_nhwc.shape[0]
    groups = []
    for a in range(2):          # pool window row offset
        for bo in range(2):     # pool window col offset
            slabs = []
            for dh in range(3):
                for dw in range(3):
                    # conv row = 2*ph + a, patch row = 2*ph + a + dh, ph = 0..6
                    s = x_nhwc[:, a + dh:a + dh + 13:2,
                               bo + dw:bo + dw + 13:2, :]       # (B, 7, 7, 3)
                    slabs.append(s)
            g = jnp.concatenate(slabs, axis=-1).reshape(B, 49, 27)
            g = jnp.pad(g, ((0, 0), (0, pool_pad - 49), (0, 0)))  # rows 49..55 = 0
            groups.append(g)
    patches = jnp.concatenate(groups, axis=1)                   # (B, 224, 27)
    return patches.reshape(B * 4 * pool_pad, 27)


def _pick_block_batch(B, max_bt=32):
    """Block batch: big (per-step overhead) but keep >= 2 grid steps (v7x 2 TCs)."""
    if B <= 1:
        return 1
    return min(max_bt, (B + 1) // 2)


def simplenet_forward(x_nchw, w_conv, b_conv, w_fc, b_fc):
    """x_nchw: (B, 3, 16, 16) float32 -> (B, 2) float32."""
    B = x_nchw.shape[0]

    # parameter re-layouts (cheap XLA glue, done once per call)
    wc_mat = jnp.transpose(w_conv, (2, 3, 1, 0)).reshape(27, 16)        # (k, co)
    bc_row = b_conv.reshape(1, 16)
    # torch fc flat index = c*49 + p  ->  wf_mat[o, p, c], zero-padded to p=56
    wf_mat = jnp.pad(jnp.transpose(w_fc.reshape(2, 16, 49), (0, 2, 1)),
                     ((0, 0), (0, POOL_PAD - 49), (0, 0)))              # (2,56,16)
    bf_row = b_fc.reshape(1, 2)

    x_nhwc = jnp.transpose(x_nchw, (0, 2, 3, 1))                        # (B,16,16,3)
    patches = im2col_pool_groups(x_nhwc)                                # (B*224, 27)

    bt = _pick_block_batch(B)
    b_pad = -(-B // bt) * bt
    if b_pad != B:   # pad batch to a multiple of bt (zeros; sliced off below)
        patches = jnp.pad(patches, ((0, (b_pad - B) * ROWS_PER_IMG), (0, 0)))

    out = pl.pallas_call(
        simplenet_fused_kernel,
        out_shape=jax.ShapeDtypeStruct((b_pad, 1, 2), jnp.float32),
        grid_spec=pltpu.PrefetchScalarGridSpec(
            num_scalar_prefetch=0,
            grid=(b_pad // bt,),
            in_specs=[
                pl.BlockSpec((bt * ROWS_PER_IMG, 27), lambda i: (i, 0)),
                pl.BlockSpec((27, 16), lambda i: (0, 0)),
                pl.BlockSpec((1, 16), lambda i: (0, 0)),
                pl.BlockSpec((2, POOL_PAD, 16), lambda i: (0, 0, 0)),
                pl.BlockSpec((1, 2), lambda i: (0, 0)),
            ],
            out_specs=pl.BlockSpec((bt, 1, 2), lambda i: (i, 0, 0)),
        ),
        compiler_params=pltpu.CompilerParams(
            dimension_semantics=("parallel",),
            vmem_limit_bytes=48 * 1024 * 1024,
        ),
    )(patches, wc_mat, bc_row, wf_mat, bf_row)
    return out.reshape(b_pad, 2)[:B]


# ----------------------------------------------------------------------------
# Pure-JAX reference (matches PyTorch semantics) for correctness check
# ----------------------------------------------------------------------------
def reference_forward(x, w_conv, b_conv, w_fc, b_fc):
    conv = jax.lax.conv_general_dilated(
        x, w_conv, window_strides=(1, 1), padding="VALID",
        dimension_numbers=("NCHW", "OIHW", "NCHW"))
    conv = jax.nn.relu(conv + b_conv[None, :, None, None])
    pooled = jax.lax.reduce_window(conv, -jnp.inf, jax.lax.max,
                                   (1, 1, 2, 2), (1, 1, 2, 2), "VALID")
    flat = pooled.reshape(pooled.shape[0], -1)                          # (B, 784)
    return flat @ w_fc.T + b_fc


if __name__ == "__main__":
    key = jax.random.PRNGKey(0)
    k_x, k_wc, k_bc, k_wf, k_bf = jax.random.split(key, 5)

    B = 2
    x = jax.random.normal(k_x, (B, 3, 16, 16), dtype=jnp.float32)       # NCHW

    # deterministic parameter init (PyTorch module shapes)
    w_conv = 0.1 * jax.random.normal(k_wc, (16, 3, 3, 3), dtype=jnp.float32)
    b_conv = 0.1 * jax.random.normal(k_bc, (16,), dtype=jnp.float32)
    w_fc = 0.1 * jax.random.normal(k_wf, (2, 16 * 7 * 7), dtype=jnp.float32)
    b_fc = 0.1 * jax.random.normal(k_bf, (2,), dtype=jnp.float32)

    fwd = jax.jit(simplenet_forward)
    out = jax.block_until_ready(fwd(x, w_conv, b_conv, w_fc, b_fc))

    ref = jax.block_until_ready(reference_forward(x, w_conv, b_conv, w_fc, b_fc))

    assert out.shape == (B, 2)
    assert jnp.allclose(out, ref, rtol=1e-4, atol=1e-4), (out, ref)

    print("KERNEL_OK")
</pallas_src>

<mosaic_0001>
module attributes {stable_mosaic.version = 11 : i64} {
  func.func @simplenet_fused_kernel(%arg0: i32, %arg1: memref<224x27xf32, #tpu.memory_space<vmem>>, %arg2: memref<27x16xf32, #tpu.memory_space<vmem>>, %arg3: memref<1x16xf32, #tpu.memory_space<vmem>>, %arg4: memref<2x56x16xf32, #tpu.memory_space<vmem>>, %arg5: memref<1x2xf32, #tpu.memory_space<vmem>>, %arg6: memref<1x1x2xf32, #tpu.memory_space<vmem>>) attributes {dimension_semantics = [#tpu.dimension_semantics<parallel>], iteration_bounds = array<i64: 2>, scalar_prefetch = 0 : i64, scratch_operands = 0 : i64, tpu.core_type = #tpu.core_type<tc>, window_params = [{transform_indices = @transform_0, window_bounds = array<i64: 224, 27>}, {pipeline_mode = #tpu.pipeline_mode<synchronous>, transform_indices = @transform_1, window_bounds = array<i64: 27, 16>}, {pipeline_mode = #tpu.pipeline_mode<synchronous>, transform_indices = @transform_2, window_bounds = array<i64: 1, 16>}, {pipeline_mode = #tpu.pipeline_mode<synchronous>, transform_indices = @transform_3, window_bounds = array<i64: 2, 56, 16>}, {pipeline_mode = #tpu.pipeline_mode<synchronous>, transform_indices = @transform_4, window_bounds = array<i64: 1, 2>}, {transform_indices = @transform_5, window_bounds = array<i64: 1, 1, 2>}]} {
    %c0 = arith.constant 0 : index
    %c0_0 = arith.constant 0 : index
    %0 = vector.load %arg1[%c0, %c0_0] : memref<224x27xf32, #tpu.memory_space<vmem>>, vector<224x27xf32>
    %c0_1 = arith.constant 0 : index
    %c0_2 = arith.constant 0 : index
    %1 = vector.load %arg2[%c0_1, %c0_2] : memref<27x16xf32, #tpu.memory_space<vmem>>, vector<27x16xf32>
    %cst = arith.constant dense<0.000000e+00> : vector<224x16xf32>
    %2 = tpu.matmul %0, %1, %cst {dimension_numbers = #tpu.dot_dimension_numbers<[1], [0], [0], [1], [0, 0, 1, 1], [], []>} : vector<224x27xf32>, vector<27x16xf32>, vector<224x16xf32> -> vector<224x16xf32>
    %3 = vector.shape_cast %2 : vector<224x16xf32> to vector<1x224x16xf32>
    %4 = vector.extract_strided_slice %3 {offsets = [0, 0, 0], sizes = [1, 56, 16], strides = [1, 1, 1]} : vector<1x224x16xf32> to vector<1x56x16xf32>
    %5 = vector.extract_strided_slice %3 {offsets = [0, 56, 0], sizes = [1, 56, 16], strides = [1, 1, 1]} : vector<1x224x16xf32> to vector<1x56x16xf32>
    %6 = arith.maximumf %4, %5 : vector<1x56x16xf32>
    %7 = vector.extract_strided_slice %3 {offsets = [0, 112, 0], sizes = [1, 56, 16], strides = [1, 1, 1]} : vector<1x224x16xf32> to vector<1x56x16xf32>
    %8 = vector.extract_strided_slice %3 {offsets = [0, 168, 0], sizes = [1, 56, 16], strides = [1, 1, 1]} : vector<1x224x16xf32> to vector<1x56x16xf32>
    %9 = arith.maximumf %7, %8 : vector<1x56x16xf32>
    %10 = arith.maximumf %6, %9 : vector<1x56x16xf32>
    %c0_3 = arith.constant 0 : index
    %c0_4 = arith.constant 0 : index
    %11 = vector.load %arg3[%c0_3, %c0_4] : memref<1x16xf32, #tpu.memory_space<vmem>>, vector<1x16xf32>
    %12 = vector.shape_cast %11 : vector<1x16xf32> to vector<1x1x16xf32>
    %13 = vector.broadcast %12 : vector<1x1x16xf32> to vector<1x56x16xf32>
    %14 = arith.addf %10, %13 : vector<1x56x16xf32>
    %cst_5 = arith.constant 0.000000e+00 : f32
    %15 = vector.broadcast %cst_5 : f32 to vector<1x56x16xf32>
    %16 = arith.maximumf %14, %15 : vector<1x56x16xf32>
    %c0_6 = arith.constant 0 : index
    %c0_7 = arith.constant 0 : index
    %c0_8 = arith.constant 0 : index
    %17 = vector.load %arg4[%c0_6, %c0_7, %c0_8] : memref<2x56x16xf32, #tpu.memory_space<vmem>>, vector<1x56x16xf32>
    %18 = vector.shape_cast %17 : vector<1x56x16xf32> to vector<56x16xf32>
    %19 = vector.shape_cast %18 : vector<56x16xf32> to vector<1x56x16xf32>
    %20 = arith.mulf %16, %19 : vector<1x56x16xf32>
    %cst_9 = arith.constant dense<0.000000e+00> : vector<1x56xf32>
    %21 = vector.multi_reduction <add>, %20, %cst_9 [2] : vector<1x56x16xf32> to vector<1x56xf32>
    %22 = vector.shape_cast %21 : vector<1x56xf32> to vector<1x56x1xf32>
    %cst_10 = arith.constant dense<0.000000e+00> : vector<1x1xf32>
    %23 = vector.multi_reduction <add>, %22, %cst_10 [1] : vector<1x56x1xf32> to vector<1x1xf32>
    %24 = vector.shape_cast %23 : vector<1x1xf32> to vector<1x1x1xf32>
    %c1 = arith.constant 1 : index
    %c0_11 = arith.constant 0 : index
    %c0_12 = arith.constant 0 : index
    %25 = vector.load %arg4[%c1, %c0_11, %c0_12] : memref<2x56x16xf32, #tpu.memory_space<vmem>>, vector<1x56x16xf32>
    %26 = vector.shape_cast %25 : vector<1x56x16xf32> to vector<56x16xf32>
    %27 = vector.shape_cast %26 : vector<56x16xf32> to vector<1x56x16xf32>
    %28 = arith.mulf %16, %27 : vector<1x56x16xf32>
    %cst_13 = arith.constant dense<0.000000e+00> : vector<1x56xf32>
    %29 = vector.multi_reduction <add>, %28, %cst_13 [2] : vector<1x56x16xf32> to vector<1x56xf32>
    %30 = vector.shape_cast %29 : vector<1x56xf32> to vector<1x56x1xf32>
    %cst_14 = arith.constant dense<0.000000e+00> : vector<1x1xf32>
    %31 = vector.multi_reduction <add>, %30, %cst_14 [1] : vector<1x56x1xf32> to vector<1x1xf32>
    %32 = vector.shape_cast %31 : vector<1x1xf32> to vector<1x1x1xf32>
    %33 = tpu.concatenate %24, %32 in 2 : vector<1x1x1xf32>, vector<1x1x1xf32> -> vector<1x1x2xf32>
    %c0_15 = arith.constant 0 : index
    %c0_16 = arith.constant 0 : index
    %34 = vector.load %arg5[%c0_15, %c0_16] : memref<1x2xf32, #tpu.memory_space<vmem>>, vector<1x2xf32>
    %35 = vector.shape_cast %34 : vector<1x2xf32> to vector<1x1x2xf32>
    %36 = arith.addf %33, %35 : vector<1x1x2xf32>
    %c0_17 = arith.constant 0 : index
    %c0_18 = arith.constant 0 : index
    %c0_19 = arith.constant 0 : index
    %37 = vector.load %arg6[%c0_17, %c0_18, %c0_19] : memref<1x1x2xf32, #tpu.memory_space<vmem>>, vector<1x1x2xf32>
    tpu.vector_store %arg6[%c0_17, %c0_18, %c0_19], %36 {strides = array<i32>} : memref<1x1x2xf32, #tpu.memory_space<vmem>>, vector<1x1x2xf32>,
    return
  }
  func.func @transform_0(%arg0: i32) -> (i32, i32) {
    %c0_i32 = arith.constant 0 : i32
    %c0_i32_0 = arith.constant 0 : i32
    return %arg0, %c0_i32 : i32, i32
  }
  func.func @transform_1(%arg0: i32) -> (i32, i32) {
    %c0_i32 = arith.constant 0 : i32
    %c0_i32_0 = arith.constant 0 : i32
    %c0_i32_1 = arith.constant 0 : i32
    return %c0_i32, %c0_i32_0 : i32, i32
  }
  func.func @transform_2(%arg0: i32) -> (i32, i32) {
    %c0_i32 = arith.constant 0 : i32
    %c0_i32_0 = arith.constant 0 : i32
    %c0_i32_1 = arith.constant 0 : i32
    return %c0_i32, %c0_i32_0 : i32, i32
  }
  func.func @transform_3(%arg0: i32) -> (i32, i32, i32) {
    %c0_i32 = arith.constant 0 : i32
    %c0_i32_0 = arith.constant 0 : i32
    %c0_i32_1 = arith.constant 0 : i32
    %c0_i32_2 = arith.constant 0 : i32
    return %c0_i32, %c0_i32_0, %c0_i32_1 : i32, i32, i32
  }
  func.func @transform_4(%arg0: i32) -> (i32, i32) {
    %c0_i32 = arith.constant 0 : i32
    %c0_i32_0 = arith.constant 0 : i32
    %c0_i32_1 = arith.constant 0 : i32
    return %c0_i32, %c0_i32_0 : i32, i32
  }
  func.func @transform_5(%arg0: i32) -> (i32, i32, i32) {
    %c0_i32 = arith.constant 0 : i32
    %c0_i32_0 = arith.constant 0 : i32
    %c0_i32_1 = arith.constant 0 : i32
    return %arg0, %c0_i32, %c0_i32_0 : i32, i32, i32
  }
}

</mosaic_0001>

<llo_original>
// kernel: simplenet_forward.1
$region0: #{simplenet_forward.1}
  #allocation0 [shape = 'u32[]', space=smem, size = 0x4, offset = 0x4, fixed_abs, tag = 'smem constant byte address 0x4 - core index']
  #allocation1 [shape = 'u32[144,128]{1,0:T(1,128)}', space=vmem, size = 0x12000, scoped, tag = 'internal scratch']
  %s0 = inlined_call_operand.vmem [shape: f32[448,27], index: 0, kind: input, shape index: {}]
  %s1 = inlined_call_operand.vmem [shape: f32[27,16], index: 1, kind: input, shape index: {}]
  %s2 = inlined_call_operand.vmem [shape: f32[1,16], index: 2, kind: input, shape index: {}]
  %s3 = inlined_call_operand.vmem [shape: f32[2,56,16], index: 3, kind: input, shape index: {}]
  %s4 = inlined_call_operand.vmem [shape: f32[1,2], index: 4, kind: input, shape index: {}]
  %s5 = inlined_call_operand.hbm [shape: f32[2,1,2], index: 5, kind: output, shape index: {}]
  %s6 = sld [smem:[#allocation0]]
  $region53: #{simplenet_forward.1} parent=0
    _
  %s8 = ssub.s32 1, %s6
  %s9 = scalar_select 0, %s8, %s6
  $region1: #{simplenet_forward.1} parent=0
    #allocation2 [shape = 'u8[1024]{0}', space=vmem, size = 0x400, scoped, tag = 'output window, operand 0']
    #allocation3 [shape = 's32[2]{0}', space=sflag, size = 0x8, scoped, tag = 'scoped memory for simplenet_forward.1']
    %10 = vsyncpa [#allocation3], 0
    %s11 = scalar_lea.sflag [#allocation3], 1
    %12 = vsyncpa %s11, 0
    loop: start=0, step=1, limit=4
    $region2: #{simplenet_forward.1} parent=1 // loop_pre_header
      _
    $region3: #{simplenet_forward.1} parent=1 // loop_header
      %s14 = sphi 0, %s18
      %p15 = scmp.ge.s32.totalorder %s14, 4
      %s24 = sphi 0, %s26
      %s27 = sphi 0, %s24
      %s28 = sphi 0, %s27
      %s44 = sphi 0, %s28
      %s48 = sphi 0, %s48
      %s50 = sphi 0, %s48
      %s51 = sphi 0, %s50
      %s65 = sphi 0, %s51
      %s69 = sphi 0, %s69
      %s71 = sphi 0, %s69
      %s72 = sphi 0, %s71
      %s86 = sphi 0, %s72
      %s90 = sphi 0, %s90
      %s92 = sphi 0, %s90
      %s93 = sphi 0, %s92
      %s107 = sphi 0, %s93
      %s111 = sphi 0, %s111
      %s113 = sphi 0, %s111
      %s114 = sphi 0, %s113
      %s128 = sphi 0, %s114
      %s134 = sphi 0, %s136
      %s137 = sphi 0, %s134
      %s138 = sphi 0, %s137
      %s154 = sphi 0, %s138
    $region4: #{simplenet_forward.1} parent=1 // loop_header_branch
      %17 = sbr.rel (%p15) target = $region8
    $region5: #{simplenet_forward.1} parent=1 // loop_body
      %s19 = ssub.s32 %s14, 1
      %s20 = ssub.s32 %s14, 2
      %s21 = sadd.s32 %s14, 1
      %s22 = ssub.s32 %s14, %s21
      %p23 = scmp.eq.s32.totalorder %s22, 0
      %s25 = sadd.s32 %s24, 1
      %s26 = scalar_select %p23, %s24, %s25
      %p29 = pneg %p23
      %p30 = scmp.eq.s32.totalorder %s14, 1
      %p31 = por %p29, %p30
      %p32 = scmp.ne.s32.totalorder %s24, %s27
      %p33 = scmp.eq.s32.totalorder %s14, 0
      %p34 = por %p32, %p33
      %p35 = scmp.ne.s32.totalorder %s24, %s27
      %p36 = scmp.eq.s32.totalorder %s19, 1
      %p37 = por %p35, %p36
      %p38 = scmp.ne.s32.totalorder %s27, %s28
      %p39 = scmp.eq.s32.totalorder %s19, 0
      %p40 = por %p38, %p39
      %p41 = scmp.ne.s32.totalorder %s27, %s28
      %p42 = scmp.eq.s32.totalorder %s20, 1
      %p43 = por %p41, %p42
      %p45 = scmp.ne.s32.totalorder %s28, %s44
      %p46 = scmp.eq.s32.totalorder %s20, 0
      %p47 = por %p45, %p46
      %s49 = sadd.s32 %s48, 1
      %p52 = scmp.eq.s32.totalorder %s14, 1
      %p53 = scmp.ne.s32.totalorder %s48, %s50
      %p54 = scmp.eq.s32.totalorder %s14, 0
      %p55 = por %p53, %p54
      %p56 = scmp.ne.s32.totalorder %s48, %s50
      %p57 = scmp.eq.s32.totalorder %s19, 1
      %p58 = por %p56, %p57
      %p59 = scmp.ne.s32.totalorder %s50, %s51
      %p60 = scmp.eq.s32.totalorder %s19, 0
      %p61 = por %p59, %p60
      %p62 = scmp.ne.s32.totalorder %s50, %s51
      %p63 = scmp.eq.s32.totalorder %s20, 1
      %p64 = por %p62, %p63
      %p66 = scmp.ne.s32.totalorder %s51, %s65
      %p67 = scmp.eq.s32.totalorder %s20, 0
      %p68 = por %p66, %p67
      %s70 = sadd.s32 %s69, 1
      %p73 = scmp.eq.s32.totalorder %s14, 1
      %p74 = scmp.ne.s32.totalorder %s69, %s71
      %p75 = scmp.eq.s32.totalorder %s14, 0
      %p76 = por %p74, %p75
      %p77 = scmp.ne.s32.totalorder %s69, %s71
      %p78 = scmp.eq.s32.totalorder %s19, 1
      %p79 = por %p77, %p78
      %p80 = scmp.ne.s32.totalorder %s71, %s72
      %p81 = scmp.eq.s32.totalorder %s19, 0
      %p82 = por %p80, %p81
      %p83 = scmp.ne.s32.totalorder %s71, %s72
      %p84 = scmp.eq.s32.totalorder %s20, 1
      %p85 = por %p83, %p84
      %p87 = scmp.ne.s32.totalorder %s72, %s86
      %p88 = scmp.eq.s32.totalorder %s20, 0
      %p89 = por %p87, %p88
      %s91 = sadd.s32 %s90, 1
      %p94 = scmp.eq.s32.totalorder %s14, 1
      %p95 = scmp.ne.s32.totalorder %s90, %s92
      %p96 = scmp.eq.s32.totalorder %s14, 0
      %p97 = por %p95, %p96
      %p98 = scmp.ne.s32.totalorder %s90, %s92
      %p99 = scmp.eq.s32.totalorder %s19, 1
      %p100 = por %p98, %p99
      %p101 = scmp.ne.s32.totalorder %s92, %s93
      %p102 = scmp.eq.s32.totalorder %s19, 0
      %p103 = por %p101, %p102
      %p104 = scmp.ne.s32.totalorder %s92, %s93
      %p105 = scmp.eq.s32.totalorder %s20, 1
      %p106 = por %p104, %p105
      %p108 = scmp.ne.s32.totalorder %s93, %s107
      %p109 = scmp.eq.s32.totalorder %s20, 0
      %p110 = por %p108, %p109
      %s112 = sadd.s32 %s111, 1
      %p115 = scmp.eq.s32.totalorder %s14, 1
      %p116 = scmp.ne.s32.totalorder %s111, %s113
      %p117 = scmp.eq.s32.totalorder %s14, 0
      %p118 = por %p116, %p117
      %p119 = scmp.ne.s32.totalorder %s111, %s113
      %p120 = scmp.eq.s32.totalorder %s19, 1
      %p121 = por %p119, %p120
      %p122 = scmp.ne.s32.totalorder %s113, %s114
      %p123 = scmp.eq.s32.totalorder %s19, 0
      %p124 = por %p122, %p123
      %p125 = scmp.ne.s32.totalorder %s113, %s114
      %p126 = scmp.eq.s32.totalorder %s20, 1
      %p127 = por %p125, %p126
      %p129 = scmp.ne.s32.totalorder %s114, %s128
      %p130 = scmp.eq.s32.totalorder %s20, 0
      %p131 = por %p129, %p130
      %s132 = ssub.s32 %s14, %s21
      %p133 = scmp.eq.s32.totalorder %s132, 0
      %s135 = sadd.s32 %s134, 1
      %s136 = scalar_select %p133, %s134, %s135
      %p139 = pneg %p133
      %p140 = scmp.eq.s32.totalorder %s14, 1
      %p141 = por %p139, %p140
      %p142 = scmp.ne.s32.totalorder %s134, %s137
      %p143 = scmp.eq.s32.totalorder %s14, 0
      %p144 = por %p142, %p143
      %p145 = scmp.ne.s32.totalorder %s134, %s137
      %p146 = scmp.eq.s32.totalorder %s19, 1
      %p147 = por %p145, %p146
      %p148 = scmp.ne.s32.totalorder %s137, %s138
      %p149 = scmp.eq.s32.totalorder %s19, 0
      %p150 = por %p148, %p149
      %p151 = scmp.ne.s32.totalorder %s137, %s138
      %p152 = scmp.eq.s32.totalorder %s20, 1
      %p153 = por %p151, %p152
      %p155 = scmp.ne.s32.totalorder %s138, %s154
      %p156 = scmp.eq.s32.totalorder %s20, 0
      %p157 = por %p155, %p156
      %p158 = scmp.le.s32.totalorder 1, %s14
      %p159 = scmp.lt.s32.totalorder %s14, 3
      %p160 = pnand %p158, %p159
      %p161 = pneg %p160
      // Predicated region
      $region9: #{simplenet_forward.1} parent=5 // pred_check
        _
      $region10: #{simplenet_forward.1} parent=5 // pred_check_branch
        %163 = sbr.rel (%p160) target = $region12
      $region11: #{simplenet_forward.1} parent=5 // pred_region
        %s164 = ssub.s32 %s14, 1
        // Predicated region
        $region13: #{simplenet_forward.1} parent=11 // pred_check
          %p165 = pneg %p61
        $region14: #{simplenet_forward.1} parent=11 // pred_check_branch
          %167 = sbr.rel (%p165) target = $region16
        $region15: #{simplenet_forward.1} parent=11 // pred_region
          _
        $region16: #{simplenet_forward.1} parent=11 // pred_fallthru
          _
        // Predicated region
        $region17: #{simplenet_forward.1} parent=11 // pred_check
          %p168 = pneg %p82
        $region18: #{simplenet_forward.1} parent=11 // pred_check_branch
          %170 = sbr.rel (%p168) target = $region20
        $region19: #{simplenet_forward.1} parent=11 // pred_region
          _
        $region20: #{simplenet_forward.1} parent=11 // pred_fallthru
          _
        // Predicated region
        $region21: #{simplenet_forward.1} parent=11 // pred_check
          %p171 = pneg %p103
        $region22: #{simplenet_forward.1} parent=11 // pred_check_branch
          %173 = sbr.rel (%p171) target = $region24
        $region23: #{simplenet_forward.1} parent=11 // pred_region
          _
        $region24: #{simplenet_forward.1} parent=11 // pred_fallthru
          _
        // Predicated region
        $region25: #{simplenet_forward.1} parent=11 // pred_check
          %p174 = pneg %p124
        $region26: #{simplenet_forward.1} parent=11 // pred_check_branch
          %176 = sbr.rel (%p174) target = $region28
        $region27: #{simplenet_forward.1} parent=11 // pred_region
          _
        $region28: #{simplenet_forward.1} parent=11 // pred_fallthru
          _
      $region12: #{simplenet_forward.1} parent=5 // pred_fallthru
        _
      %p177 = scmp.lt.s32.totalorder %s14, 2
      // Predicated region
      $region29: #{simplenet_forward.1} parent=5 // pred_check
        %p178 = pneg %p177
      $region30: #{simplenet_forward.1} parent=5 // pred_check_branch
        %180 = sbr.rel (%p178) target = $region32
      $region31: #{simplenet_forward.1} parent=5 // pred_region
        // Predicated region
        $region33: #{simplenet_forward.1} parent=31 // pred_check
          %p181 = pneg %p34
        $region34: #{simplenet_forward.1} parent=31 // pred_check_branch
          %183 = sbr.rel (%p181) target = $region36
        $region35: #{simplenet_forward.1} parent=31 // pred_region
          %s184 = smul.u32 28, %s14
          %p185 = scmp.lt.s32.totalorder %s184, 55
          %s186 = scalar_select %p185, %s184, 55
          %s187 = smul.addr %s186, 8
          %s188 = scalar_lea.vmem %s0, %s187
          %s189 = smul.u32 28, %s14
        $region36: #{simplenet_forward.1} parent=31 // pred_fallthru
          _
      $region32: #{simplenet_forward.1} parent=5 // pred_fallthru
        _
      %p190 = scmp.le.s32.totalorder 1, %s14
      %p191 = scmp.lt.s32.totalorder %s14, 3
      %p192 = pnand %p190, %p191
      %p193 = pneg %p192
      // Predicated region
      $region37: #{simplenet_forward.1} parent=5 // pred_check
        _
      $region38: #{simplenet_forward.1} parent=5 // pred_check_branch
        %195 = sbr.rel (%p192) target = $region40
      $region39: #{simplenet_forward.1} parent=5 // pred_region
        %s196 = ssub.s32 %s14, 1
        %s197 = smul.u32 28, %s19
        %p198 = scmp.lt.s32.totalorder %s197, 55
        %s199 = scalar_select %p198, %s197, 55
        %s200 = smul.addr %s199, 8
        %s201 = scalar_lea.vmem %s0, %s200
        %p202 = pneg %p40
        %p203 = pneg %p37
        %p204 = pneg %p61
        %p205 = pneg %p58
        %p206 = pneg %p82
        %p207 = pneg %p79
        %p208 = pneg %p103
        %p209 = pneg %p100
        %p210 = pneg %p124
        %p211 = pneg %p121
        %p212 = pneg %p150
        %p213 = pneg %p147
        %s214 = sand.u32 %s137, 1
        %s215 = scalar_lea.sflag [#allocation3], %s214
        %s216 = sand.u32 %s137, 1
        %s217 = scalar_lea.vmem [#allocation2], %s216
        %s218 = smul.u32 28, %s19
        %p219 = scmp.lt.s32.totalorder %s218, 55
        %s220 = scalar_select %p219, %s218, 55
        %s221 = smul.addr %s220, 8
        %s222 = scalar_lea.vmem %s0, %s221
        %s223 = smul.u32 28, %s19
        %v224 = vld [vmem:[%s222] sm:$0xff]
        %v225 = vld [vmem:[%s222 + $0x8] sm:$0xff]
        %v226 = vld [vmem:[%s222 + $0x10] sm:$0xff]
        %v227 = vld [vmem:[%s222 + $0x18] sm:$0xff]
        %v228 = vld [vmem:[%s222 + $0x20] sm:$0xff]
        %v229 = vld [vmem:[%s222 + $0x28] sm:$0xff]
        %v230 = vld [vmem:[%s222 + $0x30] sm:$0xff]
        %v231 = vld [vmem:[%s222 + $0x38] sm:$0xff]
        %v232 = vld [vmem:[%s222 + $0x40] sm:$0xff]
        %v233 = vld [vmem:[%s222 + $0x48] sm:$0xff]
        %v234 = vld [vmem:[%s222 + $0x50] sm:$0xff]
        %v235 = vld [vmem:[%s222 + $0x58] sm:$0xff]
        %v236 = vld [vmem:[%s222 + $0x60] sm:$0xff]
        %v237 = vld [vmem:[%s222 + $0x68] sm:$0xff]
        %v238 = vld [vmem:[%s222 + $0x70] sm:$0xff]
        %v239 = vld [vmem:[%s222 + $0x78] sm:$0xff]
        %v240 = vld [vmem:[%s222 + $0x80] sm:$0xff]
        %v241 = vld [vmem:[%s222 + $0x88] sm:$0xff]
        %v242 = vld [vmem:[%s222 + $0x90] sm:$0xff]
        %v243 = vld [vmem:[%s222 + $0x98] sm:$0xff]
        %v244 = vld [vmem:[%s222 + $0xa0] sm:$0xff]
        %v245 = vld [vmem:[%s222 + $0xa8] sm:$0xff]
        %v246 = vld [vmem:[%s222 + $0xb0] sm:$0xff]
        %v247 = vld [vmem:[%s222 + $0xb8] sm:$0xff]
        %v248 = vld [vmem:[%s222 + $0xc0] sm:$0xff]
        %v249 = vld [vmem:[%s222 + $0xc8] sm:$0xff]
        %v250 = vld [vmem:[%s222 + $0xd0] sm:$0xff]
        %v251 = vld [vmem:[%s222 + $0xd8] sm:$0xff]
        %v252 = vld [vmem:[%s1] sm:$0xff]
        %v253 = vld [vmem:[%s1 + $0x8] sm:$0xff]
        %v254 = vld [vmem:[%s1 + $0x10] sm:$0xff]
        %v255 = vld [vmem:[%s1 + $0x18] sm:$0x7]
        %vm256 = vcmask 220160
        %v258 = vsel %vm256, %v224, 0
        %v261 = vsel %vm256, %v225, 0
        %v264 = vsel %vm256, %v226, 0
        %v267 = vsel %vm256, %v227, 0
        %v270 = vsel %vm256, %v228, 0
        %v273 = vsel %vm256, %v229, 0
        %v276 = vsel %vm256, %v230, 0
        %v279 = vsel %vm256, %v231, 0
        %v282 = vsel %vm256, %v232, 0
        %v285 = vsel %vm256, %v233, 0
        %v288 = vsel %vm256, %v234, 0
        %v291 = vsel %vm256, %v235, 0
        %v294 = vsel %vm256, %v236, 0
        %v297 = vsel %vm256, %v237, 0
        %v300 = vsel %vm256, %v238, 0
        %v303 = vsel %vm256, %v239, 0
        %v306 = vsel %vm256, %v240, 0
        %v309 = vsel %vm256, %v241, 0
        %v312 = vsel %vm256, %v242, 0
        %v315 = vsel %vm256, %v243, 0
        %v318 = vsel %vm256, %v244, 0
        %v321 = vsel %vm256, %v245, 0
        %v324 = vsel %vm256, %v246, 0
        %v327 = vsel %vm256, %v247, 0
        %v330 = vsel %vm256, %v248, 0
        %v333 = vsel %vm256, %v249, 0
        %v336 = vsel %vm256, %v250, 0
        %v339 = vsel %vm256, %v251, 0
        %vm341 = vcmask 1042432
        %v343 = vsel %vm341, %v255, 0
        %345 = vmatprep.subr.mxu0 0.0
        %346 = vmatpush1.msra.mxu0 0.0
        %347 = vmatprep.subr.mxu0 0.0
        %348 = vmatpush1.msra.mxu0 0.0
        %349 = vmatprep.subr.mxu0 0.0
        %350 = vmatpush1.msra.mxu0 0.0
        %351 = vmatprep.subr.mxu0 0.0
        %352 = vmatpush1.msra.mxu0 0.0
        %353 = vmatprep.subr.mxu0 0.0
        %354 = vmatpush1.msra.mxu0 0.0
        %355 = vmatprep.subr.mxu0 0.0
        %356 = vmatpush1.msra.mxu0 0.0
        %357 = vmatprep.subr.mxu0 0.0
        %358 = vmatpush1.msra.mxu0 0.0
        %359 = vmatprep.subr.mxu0 0.0
        %360 = vmatpush1.msra.mxu0 0.0
        %361 = vmatprep.subr.mxu0 0.0
        %362 = vmatpush1.msra.mxu0 0.0
        %363 = vmatprep.subr.mxu0 0.0
        %364 = vmatpush1.msra.mxu0 0.0
        %365 = vmatprep.subr.mxu0 0.0
        %366 = vmatpush1.msra.mxu0 0.0
        %367 = vmatprep.subr.mxu0 0.0
        %368 = vmatpush1.msra.mxu0 0.0
        %369 = vmatprep.subr.mxu0 0.0
        %370 = vmatpush1.msra.mxu0 %v343
        %371 = vmatprep.subr.mxu0 0.0
        %372 = vmatpush1.msra.mxu0 %v254
        %373 = vmatprep.subr.mxu0 0.0
        %374 = vmatpush1.msra.mxu0 %v253
        %375 = vmatprep.subr.mxu0 0.0
        %376 = vmatpush1.msra.mxu0 %v252
        %377 = vmatprep.subr.mxu0 0.0
        %378 = vmatpush2.msra.mxu0 0.0
        %379 = vmatprep.subr.mxu0 0.0
        %380 = vmatpush2.msra.mxu0 0.0
        %381 = vmatprep.subr.mxu0 0.0
        %382 = vmatpush2.msra.mxu0 0.0
        %383 = vmatprep.subr.mxu0 0.0
        %384 = vmatpush2.msra.mxu0 0.0
        %385 = vmatprep.subr.mxu0 0.0
        %386 = vmatpush2.msra.mxu0 0.0
        %387 = vmatprep.subr.mxu0 0.0
        %388 = vmatpush2.msra.mxu0 0.0
        %389 = vmatprep.subr.mxu0 0.0
        %390 = vmatpush2.msra.mxu0 0.0
        %391 = vmatprep.subr.mxu0 0.0
        %392 = vmatpush2.msra.mxu0 0.0
        %393 = vmatprep.subr.mxu0 0.0
        %394 = vmatpush2.msra.mxu0 0.0
        %395 = vmatprep.subr.mxu0 0.0
        %396 = vmatpush2.msra.mxu0 0.0
        %397 = vmatprep.subr.mxu0 0.0
        %398 = vmatpush2.msra.mxu0 0.0
        %399 = vmatprep.subr.mxu0 0.0
        %400 = vmatpush2.msra.mxu0 0.0
        %401 = vmatprep.subr.mxu0 0.0
        %402 = vmatpush2.msra.mxu0 0.0
        %403 = vmatprep.subr.mxu0 0.0
        %404 = vmatpush2.msra.mxu0 0.0
        %405 = vmatprep.subr.mxu0 0.0
        %406 = vmatpush2.msra.mxu0 0.0
        %407 = vmatprep.subr.mxu0 0.0
        %408 = vmatpush2.msra.mxu0 0.0
        %409 = vmatprep.mubr.f32.mxu0 0.0
        %410 = vmatmul.mubr.f32.gmra.mxu0 %v258
        %v411 = vpop.f32.mrf.mxu0
        %v412 = vadd.f32 0.0, %v411
        %v413 = vpop.f32.mrf.mxu0
        %414 = vmatprep.mubr.f32.mxu0 0.0
        %415 = vmatmul.mubr.f32.gmra.mxu0 %v261
        %v416 = vpop.f32.mrf.mxu0
        %v417 = vadd.f32 0.0, %v416
        %v418 = vpop.f32.mrf.mxu0
        %419 = vmatprep.mubr.f32.mxu0 0.0
        %420 = vmatmul.mubr.f32.gmra.mxu0 %v264
        %v421 = vpop.f32.mrf.mxu0
        %v422 = vadd.f32 0.0, %v421
        %v423 = vpop.f32.mrf.mxu0
        %424 = vmatprep.mubr.f32.mxu0 0.0
        %425 = vmatmul.mubr.f32.gmra.mxu0 %v267
        %v426 = vpop.f32.mrf.mxu0
        %v427 = vadd.f32 0.0, %v426
        %v428 = vpop.f32.mrf.mxu0
        %429 = vmatprep.mubr.f32.mxu0 0.0
        %430 = vmatmul.mubr.f32.gmra.mxu0 %v270
        %v431 = vpop.f32.mrf.mxu0
        %v432 = vadd.f32 0.0, %v431
        %v433 = vpop.f32.mrf.mxu0
        %434 = vmatprep.mubr.f32.mxu0 0.0
        %435 = vmatmul.mubr.f32.gmra.mxu0 %v273
        %v436 = vpop.f32.mrf.mxu0
        %v437 = vadd.f32 0.0, %v436
        %v438 = vpop.f32.mrf.mxu0
        %439 = vmatprep.mubr.f32.mxu0 0.0
        %440 = vmatmul.mubr.f32.gmra.mxu0 %v276
        %v441 = vpop.f32.mrf.mxu0
        %v442 = vadd.f32 0.0, %v441
        %v443 = vpop.f32.mrf.mxu0
        %444 = vmatprep.mubr.f32.mxu0 0.0
        %445 = vmatmul.mubr.f32.gmra.mxu0 %v279
        %v446 = vpop.f32.mrf.mxu0
        %v447 = vadd.f32 0.0, %v446
        %v448 = vpop.f32.mrf.mxu0
        %449 = vmatprep.mubr.f32.mxu0 0.0
        %450 = vmatmul.mubr.f32.gmra.mxu0 %v282
        %v451 = vpop.f32.mrf.mxu0
        %v452 = vadd.f32 0.0, %v451
        %v453 = vpop.f32.mrf.mxu0
        %454 = vmatprep.mubr.f32.mxu0 0.0
        %455 = vmatmul.mubr.f32.gmra.mxu0 %v285
        %v456 = vpop.f32.mrf.mxu0
        %v457 = vadd.f32 0.0, %v456
        %v458 = vpop.f32.mrf.mxu0
        %459 = vmatprep.mubr.f32.mxu0 0.0
        %460 = vmatmul.mubr.f32.gmra.mxu0 %v288
        %v461 = vpop.f32.mrf.mxu0
        %v462 = vadd.f32 0.0, %v461
        %v463 = vpop.f32.mrf.mxu0
        %464 = vmatprep.mubr.f32.mxu0 0.0
        %465 = vmatmul.mubr.f32.gmra.mxu0 %v291
        %v466 = vpop.f32.mrf.mxu0
        %v467 = vadd.f32 0.0, %v466
        %v468 = vpop.f32.mrf.mxu0
        %469 = vmatprep.mubr.f32.mxu0 0.0
        %470 = vmatmul.mubr.f32.gmra.mxu0 %v294
        %v471 = vpop.f32.mrf.mxu0
        %v472 = vadd.f32 0.0, %v471
        %v473 = vpop.f32.mrf.mxu0
        %474 = vmatprep.mubr.f32.mxu0 0.0
        %475 = vmatmul.mubr.f32.gmra.mxu0 %v297
        %v476 = vpop.f32.mrf.mxu0
        %v477 = vadd.f32 0.0, %v476
        %v478 = vpop.f32.mrf.mxu0
        %479 = vmatprep.mubr.f32.mxu0 0.0
        %480 = vmatmul.mubr.f32.gmra.mxu0 %v300
        %v481 = vpop.f32.mrf.mxu0
        %v482 = vadd.f32 0.0, %v481
        %v483 = vpop.f32.mrf.mxu0
        %484 = vmatprep.mubr.f32.mxu0 0.0
        %485 = vmatmul.mubr.f32.gmra.mxu0 %v303
        %v486 = vpop.f32.mrf.mxu0
        %v487 = vadd.f32 0.0, %v486
        %v488 = vpop.f32.mrf.mxu0
        %489 = vmatprep.mubr.f32.mxu0 0.0
        %490 = vmatmul.mubr.f32.gmra.mxu0 %v306
        %v491 = vpop.f32.mrf.mxu0
        %v492 = vadd.f32 0.0, %v491
        %v493 = vpop.f32.mrf.mxu0
        %494 = vmatprep.mubr.f32.mxu0 0.0
        %495 = vmatmul.mubr.f32.gmra.mxu0 %v309
        %v496 = vpop.f32.mrf.mxu0
        %v497 = vadd.f32 0.0, %v496
        %v498 = vpop.f32.mrf.mxu0
        %499 = vmatprep.mubr.f32.mxu0 0.0
        %500 = vmatmul.mubr.f32.gmra.mxu0 %v312
        %v501 = vpop.f32.mrf.mxu0
        %v502 = vadd.f32 0.0, %v501
        %v503 = vpop.f32.mrf.mxu0
        %504 = vmatprep.mubr.f32.mxu0 0.0
        %505 = vmatmul.mubr.f32.gmra.mxu0 %v315
        %v506 = vpop.f32.mrf.mxu0
        %v507 = vadd.f32 0.0, %v506
        %v508 = vpop.f32.mrf.mxu0
        %509 = vmatprep.mubr.f32.mxu0 0.0
        %510 = vmatmul.mubr.f32.gmra.mxu0 %v318
        %v511 = vpop.f32.mrf.mxu0
        %v512 = vadd.f32 0.0, %v511
        %v513 = vpop.f32.mrf.mxu0
        %514 = vmatprep.mubr.f32.mxu0 0.0
        %515 = vmatmul.mubr.f32.gmra.mxu0 %v321
        %v516 = vpop.f32.mrf.mxu0
        %v517 = vadd.f32 0.0, %v516
        %v518 = vpop.f32.mrf.mxu0
        %519 = vmatprep.mubr.f32.mxu0 0.0
        %520 = vmatmul.mubr.f32.gmra.mxu0 %v324
        %v521 = vpop.f32.mrf.mxu0
        %v522 = vadd.f32 0.0, %v521
        %v523 = vpop.f32.mrf.mxu0
        %524 = vmatprep.mubr.f32.mxu0 0.0
        %525 = vmatmul.mubr.f32.gmra.mxu0 %v327
        %v526 = vpop.f32.mrf.mxu0
        %v527 = vadd.f32 0.0, %v526
        %v528 = vpop.f32.mrf.mxu0
        %529 = vmatprep.mubr.f32.mxu0 0.0
        %530 = vmatmul.mubr.f32.gmra.mxu0 %v330
        %v531 = vpop.f32.mrf.mxu0
        %v532 = vadd.f32 0.0, %v531
        %v533 = vpop.f32.mrf.mxu0
        %534 = vmatprep.mubr.f32.mxu0 0.0
        %535 = vmatmul.mubr.f32.gmra.mxu0 %v333
        %v536 = vpop.f32.mrf.mxu0
        %v537 = vadd.f32 0.0, %v536
        %v538 = vpop.f32.mrf.mxu0
        %539 = vmatprep.mubr.f32.mxu0 0.0
        %540 = vmatmul.mubr.f32.gmra.mxu0 %v336
        %v541 = vpop.f32.mrf.mxu0
        %v542 = vadd.f32 0.0, %v541
        %v543 = vpop.f32.mrf.mxu0
        %544 = vmatprep.mubr.f32.mxu0 0.0
        %545 = vmatmul.mubr.f32.gmra.mxu0 %v339
        %v546 = vpop.f32.mrf.mxu0
        %v547 = vadd.f32 0.0, %v546
        %v548 = vpop.f32.mrf.mxu0
        %549 = vdwg.mxu0
        %v550 = vmax.f32 %v412, %v447
        %v551 = vmax.f32 %v417, %v452
        %v552 = vmax.f32 %v422, %v457
        %v553 = vmax.f32 %v427, %v462
        %v554 = vmax.f32 %v432, %v467
        %v555 = vmax.f32 %v437, %v472
        %v556 = vmax.f32 %v442, %v477
        %v557 = vmax.f32 %v482, %v517
        %v558 = vmax.f32 %v487, %v522
        %v559 = vmax.f32 %v492, %v527
        %v560 = vmax.f32 %v497, %v532
        %v561 = vmax.f32 %v502, %v537
        %v562 = vmax.f32 %v507, %v542
        %v563 = vmax.f32 %v512, %v547
        %v564 = vmax.f32 %v550, %v557
        %v565 = vmax.f32 %v551, %v558
        %v566 = vmax.f32 %v552, %v559
        %v567 = vmax.f32 %v553, %v560
        %v568 = vmax.f32 %v554, %v561
        %v569 = vmax.f32 %v555, %v562
        %v570 = vmax.f32 %v556, %v563
        %v571 = vld [vmem:[%s2] sm:$0x1]
        %v573 = vlaneseq
        %v574 = vshrl.u32 %v573, 7
        %v575 = vsub.s32 0, %v574
        %v576 = vrot.slane %v571, %v575
        %v578 = vadd.f32 %v564, %v576
        %v579 = vadd.f32 %v565, %v576
        %v580 = vadd.f32 %v566, %v576
        %v581 = vadd.f32 %v567, %v576
        %v582 = vadd.f32 %v568, %v576
        %v583 = vadd.f32 %v569, %v576
        %v584 = vadd.f32 %v570, %v576
        %v585 = vmax.f32 %v578, 0.0
        %v586 = vmax.f32 %v579, 0.0
        %v587 = vmax.f32 %v580, 0.0
        %v588 = vmax.f32 %v581, 0.0
        %v589 = vmax.f32 %v582, 0.0
        %v590 = vmax.f32 %v583, 0.0
        %v591 = vmax.f32 %v584, 0.0
        %v592 = vld [vmem:[%s3] sm:$0xff]
        %v593 = vld [vmem:[%s3 + $0x8] sm:$0xff]
        %v594 = vld [vmem:[%s3 + $0x10] sm:$0xff]
        %v595 = vld [vmem:[%s3 + $0x18] sm:$0xff]
        %v596 = vld [vmem:[%s3 + $0x20] sm:$0xff]
        %v597 = vld [vmem:[%s3 + $0x28] sm:$0xff]
        %v598 = vld [vmem:[%s3 + $0x30] sm:$0xff]
        %v599 = vmul.f32 %v585, %v592
        %v600 = vmul.f32 %v586, %v593
        %v601 = vmul.f32 %v587, %v594
        %v602 = vmul.f32 %v588, %v595
        %v603 = vmul.f32 %v589, %v596
        %v604 = vmul.f32 %v590, %v597
        %v605 = vmul.f32 %v591, %v598
        %vm606 = vcmask 130048
        %v607 = vsel %vm606, %v599, 0.0
        %608 = vadd.xlane.f32.xlu0 %v607
        %v609 = vpop.xlane.xlu0 %608
        %v610 = vsel %vm606, %v600, 0.0
        %611 = vadd.xlane.f32.xlu0 %v610
        %v612 = vpop.xlane.xlu0 %611
        %v613 = vsel %vm606, %v601, 0.0
        %614 = vadd.xlane.f32.xlu0 %v613
        %v615 = vpop.xlane.xlu0 %614
        %v616 = vsel %vm606, %v602, 0.0
        %617 = vadd.xlane.f32.xlu0 %v616
        %v618 = vpop.xlane.xlu0 %617
        %v619 = vsel %vm606, %v603, 0.0
        %620 = vadd.xlane.f32.xlu0 %v619
        %v621 = vpop.xlane.xlu0 %620
        %v622 = vsel %vm606, %v604, 0.0
        %623 = vadd.xlane.f32.xlu0 %v622
        %v624 = vpop.xlane.xlu0 %623
        %v625 = vsel %vm606, %v605, 0.0
        %626 = vadd.xlane.f32.xlu0 %v625
        %v627 = vpop.xlane.xlu0 %626
        %v628 = vadd.f32 %v609, %v612
        %v629 = vadd.f32 %v628, %v615
        %v630 = vadd.f32 %v629, %v618
        %v631 = vadd.f32 %v630, %v621
        %v632 = vadd.f32 %v631, %v624
        %v633 = vadd.f32 %v632, %v627
        %v634 = vrot.slane %v633, 4
        %v635 = vadd.f32 %v633, %v634
        %v636 = vrot.slane %v635, 2
        %v637 = vadd.f32 %v635, %v636
        %v638 = vrot.slane %v637, 1
        %v639 = vadd.f32 %v637, %v638
        %s640 = scalar_lea.vmem %s3, 56
        %v641 = vld [vmem:[%s640] sm:$0xff]
        %v642 = vld [vmem:[%s640 + $0x8] sm:$0xff]
        %v643 = vld [vmem:[%s640 + $0x10] sm:$0xff]
        %v644 = vld [vmem:[%s640 + $0x18] sm:$0xff]
        %v645 = vld [vmem:[%s640 + $0x20] sm:$0xff]
        %v646 = vld [vmem:[%s640 + $0x28] sm:$0xff]
        %v647 = vld [vmem:[%s640 + $0x30] sm:$0xff]
        %v648 = vmul.f32 %v585, %v641
        %v649 = vmul.f32 %v586, %v642
        %v650 = vmul.f32 %v587, %v643
        %v651 = vmul.f32 %v588, %v644
        %v652 = vmul.f32 %v589, %v645
        %v653 = vmul.f32 %v590, %v646
        %v654 = vmul.f32 %v591, %v647
        %v655 = vsel %vm606, %v648, 0.0
        %656 = vadd.xlane.f32.xlu0 %v655
        %v657 = vpop.xlane.xlu0 %656
        %v658 = vsel %vm606, %v649, 0.0
        %659 = vadd.xlane.f32.xlu0 %v658
        %v660 = vpop.xlane.xlu0 %659
        %v661 = vsel %vm606, %v650, 0.0
        %662 = vadd.xlane.f32.xlu0 %v661
        %v663 = vpop.xlane.xlu0 %662
        %v664 = vsel %vm606, %v651, 0.0
        %665 = vadd.xlane.f32.xlu0 %v664
        %v666 = vpop.xlane.xlu0 %665
        %v667 = vsel %vm606, %v652, 0.0
        %668 = vadd.xlane.f32.xlu0 %v667
        %v669 = vpop.xlane.xlu0 %668
        %v670 = vsel %vm606, %v653, 0.0
        %671 = vadd.xlane.f32.xlu0 %v670
        %v672 = vpop.xlane.xlu0 %671
        %v673 = vsel %vm606, %v654, 0.0
        %674 = vadd.xlane.f32.xlu0 %v673
        %v675 = vpop.xlane.xlu0 %674
        %v676 = vadd.f32 %v657, %v660
        %v677 = vadd.f32 %v676, %v663
        %v678 = vadd.f32 %v677, %v666
        %v679 = vadd.f32 %v678, %v669
        %v680 = vadd.f32 %v679, %v672
        %v681 = vadd.f32 %v680, %v675
        %v682 = vrot.slane %v681, 4
        %v683 = vadd.f32 %v681, %v682
        %v684 = vrot.slane %v683, 2
        %v685 = vadd.f32 %v683, %v684
        %v686 = vrot.slane %v685, 1
        %v687 = vadd.f32 %v685, %v686
        %vm688 = vcmask 7168
        %v689 = vsel %vm688, %v639, %v687
        %v690 = vld [vmem:[%s4] sm:$0x1]
        %v691 = vadd.f32 %v689, %v690
        %vm692 = vcmask 8192
        %693 = vst.msk [vmem:[%s217] sm:$0x1] %vm692, %v691
        %s694 = sand.u32 %s137, 1
        %s695 = scalar_lea.sflag [#allocation3], %s694
        %s696 = sand.u32 %s137, 1
        %s697 = scalar_lea.vmem [#allocation2], %s696
        // Predicated region
        $region41: #{simplenet_forward.1} parent=39 // pred_check
          %p698 = pneg %p147
        $region42: #{simplenet_forward.1} parent=39 // pred_check_branch
          %700 = sbr.rel (%p698) target = $region44
        $region43: #{simplenet_forward.1} parent=39 // pred_region
          %s702 = ssub.s32 16, 16
          %703 = vsyncadd %s695, %s702
          %s704 = smul.addr %s19, 16
          %s705 = scalar_lea.hbm %s5, %s704
          %s707 = sshll.u32 %s697, 4
          %s708 = int_to_ptr.vmem [resolvable:$true] %s707
          %710 = dma.vmem_to_hbm [thread:$0]  %s708, 16, %s705, %s695
        $region44: #{simplenet_forward.1} parent=39 // pred_fallthru
          _
      $region40: #{simplenet_forward.1} parent=5 // pred_fallthru
        _
      %p711 = scmp.le.s32.totalorder 2, %s14
      // Predicated region
      $region45: #{simplenet_forward.1} parent=5 // pred_check
        %p712 = pneg %p711
      $region46: #{simplenet_forward.1} parent=5 // pred_check_branch
        %714 = sbr.rel (%p712) target = $region48
      $region47: #{simplenet_forward.1} parent=5 // pred_region
        %s715 = ssub.s32 %s14, 2
        // Predicated region
        $region49: #{simplenet_forward.1} parent=47 // pred_check
          %p716 = pneg %p153
        $region50: #{simplenet_forward.1} parent=47 // pred_check_branch
          %718 = sbr.rel (%p716) target = $region52
        $region51: #{simplenet_forward.1} parent=47 // pred_region
          %s719 = sand.u32 %s138, 1
          %s720 = scalar_lea.sflag [#allocation3], %s719
          %s721 = sand.u32 %s138, 1
          %s722 = scalar_lea.vmem [#allocation2], %s721
          %723 = dma.done %s720, 16
        $region52: #{simplenet_forward.1} parent=47 // pred_fallthru
          _
      $region48: #{simplenet_forward.1} parent=5 // pred_fallthru
        _
    $region6: #{simplenet_forward.1} parent=1 // loop_footer
      %s18 = sadd.s32 1, %s14
    $region7: #{simplenet_forward.1} parent=1 // loop_footer_branch
      %13 = sbr.rel target = $region3
    $region8: #{simplenet_forward.1} parent=1 // loop_exit
      _
    %724 = vsyncpa [#allocation3], 1
    %s725 = scalar_lea.sflag [#allocation3], 1
    %726 = vsyncpa %s725, 1

</llo_original>
